<compile_context>
chip_gen: v7x
topology: tpu7x:2x2x1
jax: 0.10.0
libtpu: 0.0.40
codegen_flags: <defaults>
</compile_context>

<pallas_src>
import jax
import jax.numpy as jnp
from jax.experimental import pallas as pl
from jax.experimental.pallas import tpu as pltpu


def _round_up(x: int, m: int) -> int:
    return (x + m - 1) // m * m


# ---------------------------------------------------------------------------
# Kernel
# ---------------------------------------------------------------------------
def _make_kernel(n_feats: int, n_layers: int, feat_offsets: tuple):
    """Fused concat + MLP kernel.

    Ref order: feat_0..feat_{F-1}, (w1, b1, w2, b2, ..., wn, bn), out, cat_scratch.
    dropLast=True semantics: ReLU after every layer except the last.
    """

    def kernel(*refs):
        feat_refs = refs[:n_feats]
        param_refs = refs[n_feats:n_feats + 2 * n_layers]
        o_ref = refs[n_feats + 2 * n_layers]
        cat_ref = refs[-1]                      # VMEM scratch (tb, concat_dim)

        # Fused concat: stage each feature tile at its lane offset; the
        # [batch, sum(feat)] concat tensor never touches HBM.
        if n_feats == 1:
            h = feat_refs[0][...]
        else:
            for i in range(n_feats):
                lo, hi = feat_offsets[i], feat_offsets[i + 1]
                cat_ref[:, lo:hi] = feat_refs[i][...]
            h = cat_ref[...]

        # MLP: single MXU matmul per layer with f32 accumulation.
        for j in range(n_layers):
            w_ref = param_refs[2 * j]
            b_ref = param_refs[2 * j + 1]
            # Feed the MXU the weight's native dtype (bf16-capable); layer-1
            # input is already in its native dtype.
            lhs = h if j == 0 else h.astype(w_ref.dtype)
            h = jnp.dot(lhs, w_ref[...], preferred_element_type=jnp.float32)
            h = h + b_ref[...].astype(jnp.float32)
            if j < n_layers - 1:                # dropLast=True: last layer linear
                h = jnp.maximum(h, 0.0)

        o_ref[...] = h.astype(o_ref.dtype)

    return kernel


# ---------------------------------------------------------------------------
# One-time parameter preparation (hoisted out of the per-call path)
# ---------------------------------------------------------------------------
def prepare_concat_mlp_params(params, layer_dim, *, out_pad_threshold: int = 64):
    """Zero-pad weights/biases to MXU-friendly shapes ONCE.

    Hidden dims are always lane-padded to multiples of 128 (they never leave
    VMEM; padded activation columns are exactly 0).  A narrow final dim
    (< out_pad_threshold) is left unpadded so the HBM output write stays small.
    """
    n_layers = len(layer_dim) - 1
    assert len(params) == n_layers
    padded = [int(layer_dim[0])]
    for i in range(1, len(layer_dim)):
        d = int(layer_dim[i])
        is_last = i == len(layer_dim) - 1
        padded.append(d if (is_last and d < out_pad_threshold) else _round_up(d, 128))

    w_list, b_list = [], []
    for i, (w, b) in enumerate(params):
        d_in, d_out = int(layer_dim[i]), int(layer_dim[i + 1])
        p_in, p_out = padded[i], padded[i + 1]
        w = jnp.asarray(w)
        b = jnp.reshape(jnp.asarray(b), (1, d_out))
        assert w.shape == (d_in, d_out)
        if (p_in, p_out) != (d_in, d_out):
            w = jnp.zeros((p_in, p_out), w.dtype).at[:d_in, :d_out].set(w)
        if p_out != d_out:
            b = jnp.zeros((1, p_out), b.dtype).at[:, :d_out].set(b)
        w_list.append(w)
        b_list.append(b)

    return {
        "layer_dim": tuple(int(d) for d in layer_dim),
        "padded": tuple(padded),
        "weights": tuple(w_list),
        "biases": tuple(b_list),
    }


def _resident_spec(shape, single_buffer: bool):
    """BlockSpec for a VMEM-resident parameter (constant index_map)."""
    ndim = len(shape)
    idx_map = lambda i: (0,) * ndim
    if single_buffer and hasattr(pl, "Buffered"):
        try:
            # Single buffer: constant block index never needs a second buffer.
            return pl.BlockSpec(shape, idx_map, pipeline_mode=pl.Buffered(1))
        except TypeError:
            pass
    return pl.BlockSpec(shape, idx_map)


# Capability cache for single-buffered resident weight specs.
_SINGLE_BUFFER_WEIGHTS = {"state": None}   # None = untested, True/False = known


# ---------------------------------------------------------------------------
# Forward
# ---------------------------------------------------------------------------
def concat_mlp_forward(feature_vec: dict, name_list, prepared, *, tb_target: int = 256):
    """Forward pass of ConcatMlpLayer.

    feature_vec: dict name -> [batch, feat_i]
    prepared:    output of prepare_concat_mlp_params (padded weights/biases)
    """
    if name_list is not None:
        feats = [feature_vec[n] for n in name_list]
    else:
        feats = list(feature_vec.values())

    n_feats = len(feats)
    batch = int(feats[0].shape[0])
    feat_dims = [int(f.shape[1]) for f in feats]

    layer_dim = prepared["layer_dim"]
    padded = prepared["padded"]
    n_layers = len(layer_dim) - 1
    concat_dim = layer_dim[0]
    assert sum(feat_dims) == concat_dim, "concat width must match layerDim[0]"
    out_dim, out_pad = layer_dim[-1], padded[-1]
    dtype = feats[0].dtype
    itemsize = jnp.dtype(dtype).itemsize

    weights, biases = prepared["weights"], prepared["biases"]
    param_arrays = []
    for w, b in zip(weights, biases):
        param_arrays.extend((w, b))
    weight_bytes = sum(int(p.size) * p.dtype.itemsize for p in param_arrays)

    # ---- VMEM budget (v5e/v6e: 128 MiB, v7x: 64 MiB per TensorCore) --------
    try:
        vmem_cap = int(pltpu.get_tpu_info().vmem_capacity_bytes)
    except Exception:
        vmem_cap = 64 * 1024 * 1024          # assume smallest (v7x per-TC)
    budget = int(vmem_cap * 0.8)             # ~20% headroom for compiler scratch

    # ---- batch tile size ----------------------------------------------------
    batch8 = _round_up(batch, 8)
    # >= 2 (ideally 4) grid steps -> megacore sharding + DMA/compute overlap.
    desired_tiles = 4 if batch8 >= 32 else (2 if batch8 >= 16 else 1)
    tb = min(tb_target, max(8, _round_up((batch8 + desired_tiles - 1) // desired_tiles, 8)))
    # Keep the f32 inter-layer activation tile within the 64 x 4 KiB vreg file
    # (avoids spill stores fighting v5e's single vector-store slot).
    max_hidden = max(padded[1:])
    tb = min(tb, max(8, (64 * 4096 // (4 * max_hidden)) // 8 * 8))

    def working_set(tb_):
        return (2 * weight_bytes                       # worst case: double-buffered params
                + 2 * tb_ * concat_dim * itemsize      # double-buffered feature tiles
                + 2 * tb_ * out_pad * itemsize         # double-buffered output tile
                + tb_ * concat_dim * itemsize          # concat staging scratch
                + 2 * tb_ * max_hidden * 4)            # live f32 activations

    while tb > 8 and working_set(tb) > budget:
        tb = max(8, _round_up(tb // 2, 8))

    padded_batch = _round_up(batch8, tb)
    n_tiles = padded_batch // tb
    if padded_batch != batch:
        feats = [jnp.pad(f, ((0, padded_batch - batch), (0, 0))) for f in feats]

    offsets = [0]
    for fd in feat_dims:
        offsets.append(offsets[-1] + fd)

    kernel = _make_kernel(n_feats, n_layers, tuple(offsets))
    feat_specs = [pl.BlockSpec((tb, fd), lambda i: (i, 0)) for fd in feat_dims]
    out_spec = pl.BlockSpec((tb, out_pad), lambda i: (i, 0))
    inputs = list(feats) + param_arrays

    flops = 2 * padded_batch * sum(padded[i] * padded[i + 1] for i in range(n_layers))
    bytes_accessed = (sum(int(x.size) * x.dtype.itemsize for x in inputs)
                      + padded_batch * out_pad * itemsize)
    vmem_limit = int(min(vmem_cap * 0.9,
                         max(working_set(tb) * 1.25, 16 * 1024 * 1024)))

    def run(single_buffer_weights: bool):
        in_specs = feat_specs + [_resident_spec(p.shape, single_buffer_weights)
                                 for p in param_arrays]
        return pl.pallas_call(
            kernel,
            out_shape=jax.ShapeDtypeStruct((padded_batch, out_pad), dtype),
            grid=(n_tiles,),
            in_specs=in_specs,
            out_specs=out_spec,
            scratch_shapes=[pltpu.VMEM((tb, concat_dim), dtype)],
            compiler_params=pltpu.CompilerParams(
                dimension_semantics=("parallel",),
                vmem_limit_bytes=vmem_limit),
            cost_estimate=pl.CostEstimate(flops=flops, transcendentals=0,
                                          bytes_accessed=bytes_accessed),
        )(*inputs)

    state = _SINGLE_BUFFER_WEIGHTS["state"]
    if state is None:
        try:
            out = run(True)
            out.block_until_ready()
            _SINGLE_BUFFER_WEIGHTS["state"] = True
        except Exception:
            # Single-buffered (Buffered(1)) resident specs rejected on this
            # jax/libtpu version -> fall back to default double buffering.
            _SINGLE_BUFFER_WEIGHTS["state"] = False
            out = run(False)
    else:
        out = run(bool(state))

    return out[:batch, :out_dim]


# ---------------------------------------------------------------------------
# Init / reference
# ---------------------------------------------------------------------------
def init_params(layer_dim, key):
    """Deterministic parameter init (PyTorch-Linear-like uniform fan_in scaling)."""
    params = []
    for i in range(len(layer_dim) - 1):
        d_in, d_out = layer_dim[i], layer_dim[i + 1]
        key, kw, kb = jax.random.split(key, 3)
        bound = 1.0 / jnp.sqrt(d_in)
        w = jax.random.uniform(kw, (d_in, d_out), jnp.float32, -bound, bound)
        b = jax.random.uniform(kb, (1, d_out), jnp.float32, -bound, bound)
        params.append((w, b))
    return params


def reference_forward(feature_vec, name_list, params, layer_dim):
    """Pure-JAX reference (matches the PyTorch module semantics)."""
    feats = [feature_vec[n] for n in name_list] if name_list is not None \
        else list(feature_vec.values())
    h = jnp.concatenate(feats, axis=1)
    n_layers = len(layer_dim) - 1
    for i, (w, b) in enumerate(params):
        h = h @ w + b
        if i < n_layers - 1:
            h = jnp.maximum(h, 0.0)
    return h


if __name__ == "__main__":
    key = jax.random.PRNGKey(0)

    batch = 8
    feat_dims = {"user": 16, "item": 16, "context": 32}
    name_list = ["user", "item", "context"]
    layer_dim = [sum(feat_dims.values()), 32, 16]   # 64 -> 32 -> 16

    key, *fkeys = jax.random.split(key, 1 + len(feat_dims))
    feature_vec = {
        name: jax.random.normal(fk, (batch, d), jnp.float32)
        for (name, d), fk in zip(feat_dims.items(), fkeys)
    }

    key, pkey = jax.random.split(key)
    params = init_params(layer_dim, pkey)
    # Parameter padding is done ONCE, outside the per-call path.
    prepared = prepare_concat_mlp_params(params, layer_dim)

    out = jax.block_until_ready(concat_mlp_forward(feature_vec, name_list, prepared))
    ref = reference_forward(feature_vec, name_list, params, layer_dim)
    assert out.shape == (batch, layer_dim[-1])
    assert jnp.allclose(out, ref, atol=1e-5, rtol=1e-5), "mismatch vs reference"

    # Second check: non-multiple-of-8 batch (exercises batch padding and a
    # multi-step grid) and the nameList=None path.
    batch2 = 10
    key, *f2keys = jax.random.split(key, 1 + len(feat_dims))
    feature_vec2 = {
        name: jax.random.normal(fk, (batch2, d), jnp.float32)
        for (name, d), fk in zip(feat_dims.items(), f2keys)
    }
    out2 = jax.block_until_ready(concat_mlp_forward(feature_vec2, None, prepared))
    ref2 = reference_forward(feature_vec2, None, params, layer_dim)
    assert out2.shape == (batch2, layer_dim[-1])
    assert jnp.allclose(out2, ref2, atol=1e-5, rtol=1e-5), "mismatch vs reference (2)"

    print("KERNEL_OK")
</pallas_src>

<mosaic_0001>
module attributes {stable_mosaic.version = 11 : i64} {
  func.func @kernel(%arg0: i32, %arg1: memref<8x16xf32, #tpu.memory_space<vmem>>, %arg2: memref<8x16xf32, #tpu.memory_space<vmem>>, %arg3: memref<8x32xf32, #tpu.memory_space<vmem>>, %arg4: memref<64x128xf32, #tpu.memory_space<vmem>>, %arg5: memref<1x128xf32, #tpu.memory_space<vmem>>, %arg6: memref<128x16xf32, #tpu.memory_space<vmem>>, %arg7: memref<1x16xf32, #tpu.memory_space<vmem>>, %arg8: memref<8x16xf32, #tpu.memory_space<vmem>>, %arg9: memref<8x64xf32, #tpu.memory_space<vmem>>) attributes {dimension_semantics = [#tpu.dimension_semantics<parallel>], iteration_bounds = array<i64: 1>, scalar_prefetch = 0 : i64, scratch_operands = 1 : i64, tpu.core_type = #tpu.core_type<tc>, window_params = [{transform_indices = @transform_0, window_bounds = array<i64: 8, 16>}, {transform_indices = @transform_1, window_bounds = array<i64: 8, 16>}, {transform_indices = @transform_2, window_bounds = array<i64: 8, 32>}, {pipeline_mode = #tpu.pipeline_mode<synchronous>, transform_indices = @transform_3, window_bounds = array<i64: 64, 128>}, {pipeline_mode = #tpu.pipeline_mode<synchronous>, transform_indices = @transform_4, window_bounds = array<i64: 1, 128>}, {pipeline_mode = #tpu.pipeline_mode<synchronous>, transform_indices = @transform_5, window_bounds = array<i64: 128, 16>}, {pipeline_mode = #tpu.pipeline_mode<synchronous>, transform_indices = @transform_6, window_bounds = array<i64: 1, 16>}, {transform_indices = @transform_7, window_bounds = array<i64: 8, 16>}]} {
    %c0 = arith.constant 0 : index
    %c0_0 = arith.constant 0 : index
    %0 = vector.load %arg1[%c0, %c0_0] : memref<8x16xf32, #tpu.memory_space<vmem>>, vector<8x16xf32>
    %c0_1 = arith.constant 0 : index
    %c0_2 = arith.constant 0 : index
    %1 = vector.load %arg9[%c0_1, %c0_2] : memref<8x64xf32, #tpu.memory_space<vmem>>, vector<8x16xf32>
    tpu.vector_store %arg9[%c0_1, %c0_2], %0 {strides = array<i32>} : memref<8x64xf32, #tpu.memory_space<vmem>>, vector<8x16xf32>,
    %c0_3 = arith.constant 0 : index
    %c0_4 = arith.constant 0 : index
    %2 = vector.load %arg2[%c0_3, %c0_4] : memref<8x16xf32, #tpu.memory_space<vmem>>, vector<8x16xf32>
    %c0_5 = arith.constant 0 : index
    %c16 = arith.constant 16 : index
    %3 = vector.load %arg9[%c0_5, %c16] : memref<8x64xf32, #tpu.memory_space<vmem>>, vector<8x16xf32>
    tpu.vector_store %arg9[%c0_5, %c16], %2 {strides = array<i32>} : memref<8x64xf32, #tpu.memory_space<vmem>>, vector<8x16xf32>,
    %c0_6 = arith.constant 0 : index
    %c0_7 = arith.constant 0 : index
    %4 = vector.load %arg3[%c0_6, %c0_7] : memref<8x32xf32, #tpu.memory_space<vmem>>, vector<8x32xf32>
    %c0_8 = arith.constant 0 : index
    %c32 = arith.constant 32 : index
    %5 = vector.load %arg9[%c0_8, %c32] : memref<8x64xf32, #tpu.memory_space<vmem>>, vector<8x32xf32>
    tpu.vector_store %arg9[%c0_8, %c32], %4 {strides = array<i32>} : memref<8x64xf32, #tpu.memory_space<vmem>>, vector<8x32xf32>,
    %c0_9 = arith.constant 0 : index
    %c0_10 = arith.constant 0 : index
    %6 = vector.load %arg9[%c0_9, %c0_10] : memref<8x64xf32, #tpu.memory_space<vmem>>, vector<8x64xf32>
    %c0_11 = arith.constant 0 : index
    %c0_12 = arith.constant 0 : index
    %7 = vector.load %arg4[%c0_11, %c0_12] : memref<64x128xf32, #tpu.memory_space<vmem>>, vector<64x128xf32>
    %cst = arith.constant dense<0.000000e+00> : vector<8x128xf32>
    %8 = tpu.matmul %6, %7, %cst {dimension_numbers = #tpu.dot_dimension_numbers<[1], [0], [0], [1], [0, 0, 1, 1], [], []>} : vector<8x64xf32>, vector<64x128xf32>, vector<8x128xf32> -> vector<8x128xf32>
    %c0_13 = arith.constant 0 : index
    %c0_14 = arith.constant 0 : index
    %9 = vector.load %arg5[%c0_13, %c0_14] : memref<1x128xf32, #tpu.memory_space<vmem>>, vector<1x128xf32>
    %10 = vector.broadcast %9 : vector<1x128xf32> to vector<8x128xf32>
    %11 = arith.addf %8, %10 : vector<8x128xf32>
    %cst_15 = arith.constant 0.000000e+00 : f32
    %12 = vector.broadcast %cst_15 : f32 to vector<8x128xf32>
    %13 = arith.maximumf %11, %12 : vector<8x128xf32>
    %c0_16 = arith.constant 0 : index
    %c0_17 = arith.constant 0 : index
    %14 = vector.load %arg6[%c0_16, %c0_17] : memref<128x16xf32, #tpu.memory_space<vmem>>, vector<128x16xf32>
    %cst_18 = arith.constant dense<0.000000e+00> : vector<8x16xf32>
    %15 = tpu.matmul %13, %14, %cst_18 {dimension_numbers = #tpu.dot_dimension_numbers<[1], [0], [0], [1], [0, 0, 1, 1], [], []>} : vector<8x128xf32>, vector<128x16xf32>, vector<8x16xf32> -> vector<8x16xf32>
    %c0_19 = arith.constant 0 : index
    %c0_20 = arith.constant 0 : index
    %16 = vector.load %arg7[%c0_19, %c0_20] : memref<1x16xf32, #tpu.memory_space<vmem>>, vector<1x16xf32>
    %17 = vector.broadcast %16 : vector<1x16xf32> to vector<8x16xf32>
    %18 = arith.addf %15, %17 : vector<8x16xf32>
    %c0_21 = arith.constant 0 : index
    %c0_22 = arith.constant 0 : index
    %19 = vector.load %arg8[%c0_21, %c0_22] : memref<8x16xf32, #tpu.memory_space<vmem>>, vector<8x16xf32>
    tpu.vector_store %arg8[%c0_21, %c0_22], %18 {strides = array<i32>} : memref<8x16xf32, #tpu.memory_space<vmem>>, vector<8x16xf32>,
    return
  }
  func.func @transform_0(%arg0: i32) -> (i32, i32) {
    %c0_i32 = arith.constant 0 : i32
    %c0_i32_0 = arith.constant 0 : i32
    return %arg0, %c0_i32 : i32, i32
  }
  func.func @transform_1(%arg0: i32) -> (i32, i32) {
    %c0_i32 = arith.constant 0 : i32
    %c0_i32_0 = arith.constant 0 : i32
    return %arg0, %c0_i32 : i32, i32
  }
  func.func @transform_2(%arg0: i32) -> (i32, i32) {
    %c0_i32 = arith.constant 0 : i32
    %c0_i32_0 = arith.constant 0 : i32
    return %arg0, %c0_i32 : i32, i32
  }
  func.func @transform_3(%arg0: i32) -> (i32, i32) {
    %c0_i32 = arith.constant 0 : i32
    %c0_i32_0 = arith.constant 0 : i32
    %c0_i32_1 = arith.constant 0 : i32
    return %c0_i32, %c0_i32_0 : i32, i32
  }
  func.func @transform_4(%arg0: i32) -> (i32, i32) {
    %c0_i32 = arith.constant 0 : i32
    %c0_i32_0 = arith.constant 0 : i32
    %c0_i32_1 = arith.constant 0 : i32
    return %c0_i32, %c0_i32_0 : i32, i32
  }
  func.func @transform_5(%arg0: i32) -> (i32, i32) {
    %c0_i32 = arith.constant 0 : i32
    %c0_i32_0 = arith.constant 0 : i32
    %c0_i32_1 = arith.constant 0 : i32
    return %c0_i32, %c0_i32_0 : i32, i32
  }
  func.func @transform_6(%arg0: i32) -> (i32, i32) {
    %c0_i32 = arith.constant 0 : i32
    %c0_i32_0 = arith.constant 0 : i32
    %c0_i32_1 = arith.constant 0 : i32
    return %c0_i32, %c0_i32_0 : i32, i32
  }
  func.func @transform_7(%arg0: i32) -> (i32, i32) {
    %c0_i32 = arith.constant 0 : i32
    %c0_i32_0 = arith.constant 0 : i32
    return %arg0, %c0_i32 : i32, i32
  }
}

module attributes {stable_mosaic.version = 11 : i64} {
  func.func @kernel(%arg0: i32, %arg1: memref<8x16xf32, #tpu.memory_space<vmem>>, %arg2: memref<8x16xf32, #tpu.memory_space<vmem>>, %arg3: memref<8x32xf32, #tpu.memory_space<vmem>>, %arg4: memref<64x128xf32, #tpu.memory_space<vmem>>, %arg5: memref<1x128xf32, #tpu.memory_space<vmem>>, %arg6: memref<128x16xf32, #tpu.memory_space<vmem>>, %arg7: memref<1x16xf32, #tpu.memory_space<vmem>>, %arg8: memref<8x16xf32, #tpu.memory_space<vmem>>, %arg9: memref<8x64xf32, #tpu.memory_space<vmem>>) attributes {dimension_semantics = [#tpu.dimension_semantics<parallel>], iteration_bounds = array<i64: 1>, scalar_prefetch = 0 : i64, scratch_operands = 1 : i64, tpu.core_type = #tpu.core_type<tc>, window_params = [{transform_indices = @transform_0, window_bounds = array<i64: 8, 16>}, {transform_indices = @transform_1, window_bounds = array<i64: 8, 16>}, {transform_indices = @transform_2, window_bounds = array<i64: 8, 32>}, {pipeline_mode = #tpu.pipeline_mode<synchronous>, transform_indices = @transform_3, window_bounds = array<i64: 64, 128>}, {pipeline_mode = #tpu.pipeline_mode<synchronous>, transform_indices = @transform_4, window_bounds = array<i64: 1, 128>}, {pipeline_mode = #tpu.pipeline_mode<synchronous>, transform_indices = @transform_5, window_bounds = array<i64: 128, 16>}, {pipeline_mode = #tpu.pipeline_mode<synchronous>, transform_indices = @transform_6, window_bounds = array<i64: 1, 16>}, {transform_indices = @transform_7, window_bounds = array<i64: 8, 16>}]} {
    %c0 = arith.constant 0 : index
    %c0_0 = arith.constant 0 : index
    %0 = vector.load %arg1[%c0, %c0_0] : memref<8x16xf32, #tpu.memory_space<vmem>>, vector<8x16xf32>
    %c0_1 = arith.constant 0 : index
    %c0_2 = arith.constant 0 : index
    %1 = vector.load %arg9[%c0_1, %c0_2] : memref<8x64xf32, #tpu.memory_space<vmem>>, vector<8x16xf32>
    tpu.vector_store %arg9[%c0_1, %c0_2], %0 {strides = array<i32>} : memref<8x64xf32, #tpu.memory_space<vmem>>, vector<8x16xf32>,
    %c0_3 = arith.constant 0 : index
    %c0_4 = arith.constant 0 : index
    %2 = vector.load %arg2[%c0_3, %c0_4] : memref<8x16xf32, #tpu.memory_space<vmem>>, vector<8x16xf32>
    %c0_5 = arith.constant 0 : index
    %c16 = arith.constant 16 : index
    %3 = vector.load %arg9[%c0_5, %c16] : memref<8x64xf32, #tpu.memory_space<vmem>>, vector<8x16xf32>
    tpu.vector_store %arg9[%c0_5, %c16], %2 {strides = array<i32>} : memref<8x64xf32, #tpu.memory_space<vmem>>, vector<8x16xf32>,
    %c0_6 = arith.constant 0 : index
    %c0_7 = arith.constant 0 : index
    %4 = vector.load %arg3[%c0_6, %c0_7] : memref<8x32xf32, #tpu.memory_space<vmem>>, vector<8x32xf32>
    %c0_8 = arith.constant 0 : index
    %c32 = arith.constant 32 : index
    %5 = vector.load %arg9[%c0_8, %c32] : memref<8x64xf32, #tpu.memory_space<vmem>>, vector<8x32xf32>
    tpu.vector_store %arg9[%c0_8, %c32], %4 {strides = array<i32>} : memref<8x64xf32, #tpu.memory_space<vmem>>, vector<8x32xf32>,
    %c0_9 = arith.constant 0 : index
    %c0_10 = arith.constant 0 : index
    %6 = vector.load %arg9[%c0_9, %c0_10] : memref<8x64xf32, #tpu.memory_space<vmem>>, vector<8x64xf32>
    %c0_11 = arith.constant 0 : index
    %c0_12 = arith.constant 0 : index
    %7 = vector.load %arg4[%c0_11, %c0_12] : memref<64x128xf32, #tpu.memory_space<vmem>>, vector<64x128xf32>
    %cst = arith.constant dense<0.000000e+00> : vector<8x128xf32>
    %8 = tpu.matmul %6, %7, %cst {dimension_numbers = #tpu.dot_dimension_numbers<[1], [0], [0], [1], [0, 0, 1, 1], [], []>} : vector<8x64xf32>, vector<64x128xf32>, vector<8x128xf32> -> vector<8x128xf32>
    %c0_13 = arith.constant 0 : index
    %c0_14 = arith.constant 0 : index
    %9 = vector.load %arg5[%c0_13, %c0_14] : memref<1x128xf32, #tpu.memory_space<vmem>>, vector<1x128xf32>
    %10 = vector.broadcast %9 : vector<1x128xf32> to vector<8x128xf32>
    %11 = arith.addf %8, %10 : vector<8x128xf32>
    %cst_15 = arith.constant 0.000000e+00 : f32
    %12 = vector.broadcast %cst_15 : f32 to vector<8x128xf32>
    %13 = arith.maximumf %11, %12 : vector<8x128xf32>
    %c0_16 = arith.constant 0 : index
    %c0_17 = arith.constant 0 : index
    %14 = vector.load %arg6[%c0_16, %c0_17] : memref<128x16xf32, #tpu.memory_space<vmem>>, vector<128x16xf32>
    %cst_18 = arith.constant dense<0.000000e+00> : vector<8x16xf32>
    %15 = tpu.matmul %13, %14, %cst_18 {dimension_numbers = #tpu.dot_dimension_numbers<[1], [0], [0], [1], [0, 0, 1, 1], [], []>} : vector<8x128xf32>, vector<128x16xf32>, vector<8x16xf32> -> vector<8x16xf32>
    %c0_19 = arith.constant 0 : index
    %c0_20 = arith.constant 0 : index
    %16 = vector.load %arg7[%c0_19, %c0_20] : memref<1x16xf32, #tpu.memory_space<vmem>>, vector<1x16xf32>
    %17 = vector.broadcast %16 : vector<1x16xf32> to vector<8x16xf32>
    %18 = arith.addf %15, %17 : vector<8x16xf32>
    %c0_21 = arith.constant 0 : index
    %c0_22 = arith.constant 0 : index
    %19 = vector.load %arg8[%c0_21, %c0_22] : memref<8x16xf32, #tpu.memory_space<vmem>>, vector<8x16xf32>
    tpu.vector_store %arg8[%c0_21, %c0_22], %18 {strides = array<i32>} : memref<8x16xf32, #tpu.memory_space<vmem>>, vector<8x16xf32>,
    return
  }
  func.func @transform_0(%arg0: i32) -> (i32, i32) {
    %c0_i32 = arith.constant 0 : i32
    %c0_i32_0 = arith.constant 0 : i32
    return %arg0, %c0_i32 : i32, i32
  }
  func.func @transform_1(%arg0: i32) -> (i32, i32) {
    %c0_i32 = arith.constant 0 : i32
    %c0_i32_0 = arith.constant 0 : i32
    return %arg0, %c0_i32 : i32, i32
  }
  func.func @transform_2(%arg0: i32) -> (i32, i32) {
    %c0_i32 = arith.constant 0 : i32
    %c0_i32_0 = arith.constant 0 : i32
    return %arg0, %c0_i32 : i32, i32
  }
  func.func @transform_3(%arg0: i32) -> (i32, i32) {
    %c0_i32 = arith.constant 0 : i32
    %c0_i32_0 = arith.constant 0 : i32
    %c0_i32_1 = arith.constant 0 : i32
    return %c0_i32, %c0_i32_0 : i32, i32
  }
  func.func @transform_4(%arg0: i32) -> (i32, i32) {
    %c0_i32 = arith.constant 0 : i32
    %c0_i32_0 = arith.constant 0 : i32
    %c0_i32_1 = arith.constant 0 : i32
    return %c0_i32, %c0_i32_0 : i32, i32
  }
  func.func @transform_5(%arg0: i32) -> (i32, i32) {
    %c0_i32 = arith.constant 0 : i32
    %c0_i32_0 = arith.constant 0 : i32
    %c0_i32_1 = arith.constant 0 : i32
    return %c0_i32, %c0_i32_0 : i32, i32
  }
  func.func @transform_6(%arg0: i32) -> (i32, i32) {
    %c0_i32 = arith.constant 0 : i32
    %c0_i32_0 = arith.constant 0 : i32
    %c0_i32_1 = arith.constant 0 : i32
    return %c0_i32, %c0_i32_0 : i32, i32
  }
  func.func @transform_7(%arg0: i32) -> (i32, i32) {
    %c0_i32 = arith.constant 0 : i32
    %c0_i32_0 = arith.constant 0 : i32
    return %arg0, %c0_i32 : i32, i32
  }
}

</mosaic_0001>

<llo_original>
// kernel: tpu_custom_call.1
$region0: #{tpu_custom_call.1}
  #allocation0 [shape = 'u32[]', space=smem, size = 0x4, offset = 0x4, fixed_abs, tag = 'smem constant byte address 0x4 - core index']
  #allocation1 [shape = 'u32[144,128]{1,0:T(1,128)}', space=vmem, size = 0x12000, scoped, tag = 'internal scratch']
  #allocation2 [shape = 'f32[8,64]{1,0:T(8,128)}', space=vmem, size = 0x1000, scoped, tag = 'scratch operand']
  %s0 = inlined_call_operand.vmem [shape: f32[8,16], index: 0, kind: input, shape index: {}]
  %s1 = inlined_call_operand.vmem [shape: f32[8,16], index: 1, kind: input, shape index: {}]
  %s2 = inlined_call_operand.vmem [shape: f32[8,32], index: 2, kind: input, shape index: {}]
  %s3 = inlined_call_operand.vmem [shape: f32[64,128], index: 3, kind: input, shape index: {}]
  %s4 = inlined_call_operand.vmem [shape: f32[1,128], index: 4, kind: input, shape index: {}]
  %s5 = inlined_call_operand.vmem [shape: f32[128,16], index: 5, kind: input, shape index: {}]
  %s6 = inlined_call_operand.vmem [shape: f32[1,16], index: 6, kind: input, shape index: {}]
  %s7 = inlined_call_operand.hbm [shape: f32[8,16], index: 7, kind: output, shape index: {}]
  %s8 = sld [smem:[#allocation0]]
  $region38: #{tpu_custom_call.1} parent=0
    _
  %s10 = ssub.s32 1, %s8
  %s11 = scalar_select 0, %s10, %s8
  $region1: #{tpu_custom_call.1} parent=0
    #allocation3 [shape = 'u8[4096]{0}', space=vmem, size = 0x1000, scoped, tag = 'output window, operand 0, single buffered']
    #allocation4 [shape = 's32[1]{0}', space=sflag, size = 0x4, scoped, tag = 'scoped memory for tpu_custom_call.1']
    %12 = vsyncpa [#allocation4], 0
    // Predicated region
    $region2: #{tpu_custom_call.1} parent=1 // pred_check
      _
    $region3: #{tpu_custom_call.1} parent=1 // pred_check_branch
      %14 = sbr.rel (0) target = $region5
    $region4: #{tpu_custom_call.1} parent=1 // pred_region
      _
    $region5: #{tpu_custom_call.1} parent=1 // pred_fallthru
      _
    // Predicated region
    $region6: #{tpu_custom_call.1} parent=1 // pred_check
      _
    $region7: #{tpu_custom_call.1} parent=1 // pred_check_branch
      %16 = sbr.rel (0) target = $region9
    $region8: #{tpu_custom_call.1} parent=1 // pred_region
      _
    $region9: #{tpu_custom_call.1} parent=1 // pred_fallthru
      _
    // Predicated region
    $region10: #{tpu_custom_call.1} parent=1 // pred_check
      _
    $region11: #{tpu_custom_call.1} parent=1 // pred_check_branch
      %18 = sbr.rel (0) target = $region13
    $region12: #{tpu_custom_call.1} parent=1 // pred_region
      _
    $region13: #{tpu_custom_call.1} parent=1 // pred_fallthru
      _
    // Predicated region
    $region14: #{tpu_custom_call.1} parent=1 // pred_check
      _
    $region15: #{tpu_custom_call.1} parent=1 // pred_check_branch
      %20 = sbr.rel (0) target = $region17
    $region16: #{tpu_custom_call.1} parent=1 // pred_region
      _
    $region17: #{tpu_custom_call.1} parent=1 // pred_fallthru
      _
    // Predicated region
    $region18: #{tpu_custom_call.1} parent=1 // pred_check
      _
    $region19: #{tpu_custom_call.1} parent=1 // pred_check_branch
      %22 = sbr.rel (0) target = $region21
    $region20: #{tpu_custom_call.1} parent=1 // pred_region
      _
    $region21: #{tpu_custom_call.1} parent=1 // pred_fallthru
      _
    // Predicated region
    $region22: #{tpu_custom_call.1} parent=1 // pred_check
      _
    $region23: #{tpu_custom_call.1} parent=1 // pred_check_branch
      %24 = sbr.rel (0) target = $region25
    $region24: #{tpu_custom_call.1} parent=1 // pred_region
      _
    $region25: #{tpu_custom_call.1} parent=1 // pred_fallthru
      _
    // Predicated region
    $region26: #{tpu_custom_call.1} parent=1 // pred_check
      _
    $region27: #{tpu_custom_call.1} parent=1 // pred_check_branch
      %26 = sbr.rel (0) target = $region29
    $region28: #{tpu_custom_call.1} parent=1 // pred_region
      _
    $region29: #{tpu_custom_call.1} parent=1 // pred_fallthru
      _
    %v27 = vld [vmem:[%s0] sm:$0xff]
    %vm28 = vcmask 130048
    %29 = vst.msk [vmem:[#allocation2] sm:$0xff] %vm28, %v27
    %v30 = vld [vmem:[%s1] sm:$0xff]
    %32 = vrot.lane.b32.xlu0 %v30, 16
    %v33 = vpop.permute.xlu0 %32
    %vm35 = vcmask 261248
    %36 = vst.msk [vmem:[#allocation2] sm:$0xff] %vm35, %v33
    %v37 = vld [vmem:[%s2] sm:$0xff]
    %39 = vrot.lane.b32.xlu0 %v37, 32
    %v40 = vpop.permute.xlu0 %39
    %vm42 = vcmask 523520
    %43 = vst.msk [vmem:[#allocation2] sm:$0xff] %vm42, %v40
    %v44 = vld [vmem:[#allocation2] sm:$0xff]
    %v45 = vld [vmem:[%s3] sm:$0xff]
    %v46 = vld [vmem:[%s3 + $0x8] sm:$0xff]
    %v47 = vld [vmem:[%s3 + $0x10] sm:$0xff]
    %v48 = vld [vmem:[%s3 + $0x18] sm:$0xff]
    %v49 = vld [vmem:[%s3 + $0x20] sm:$0xff]
    %v50 = vld [vmem:[%s3 + $0x28] sm:$0xff]
    %v51 = vld [vmem:[%s3 + $0x30] sm:$0xff]
    %v52 = vld [vmem:[%s3 + $0x38] sm:$0xff]
    %v53 = vld [vmem:[%s4] sm:$0x1]
    %v55 = vlaneseq
    %v56 = vshrl.u32 %v55, 7
    %v57 = vsub.s32 0, %v56
    %v58 = vrot.slane %v53, %v57
    %vm60 = vcmask 523264
    %v62 = vsel %vm60, %v44, 0
    %64 = vmatprep.subr.mxu0 0.0
    %65 = vmatpush1.msra.mxu0 %v45
    %66 = vmatprep.subr.mxu0 0.0
    %67 = vmatpush1.msra.mxu0 %v46
    %68 = vmatprep.subr.mxu0 0.0
    %69 = vmatpush1.msra.mxu0 %v47
    %70 = vmatprep.subr.mxu0 0.0
    %71 = vmatpush1.msra.mxu0 %v48
    %72 = vmatprep.subr.mxu0 0.0
    %73 = vmatpush1.msra.mxu0 %v49
    %74 = vmatprep.subr.mxu0 0.0
    %75 = vmatpush1.msra.mxu0 %v50
    %76 = vmatprep.subr.mxu0 0.0
    %77 = vmatpush1.msra.mxu0 %v51
    %78 = vmatprep.subr.mxu0 0.0
    %79 = vmatpush1.msra.mxu0 %v52
    %80 = vmatprep.subr.mxu0 0.0
    %81 = vmatpush1.msra.mxu0 0.0
    %82 = vmatprep.subr.mxu0 0.0
    %83 = vmatpush1.msra.mxu0 0.0
    %84 = vmatprep.subr.mxu0 0.0
    %85 = vmatpush1.msra.mxu0 0.0
    %86 = vmatprep.subr.mxu0 0.0
    %87 = vmatpush1.msra.mxu0 0.0
    %88 = vmatprep.subr.mxu0 0.0
    %89 = vmatpush1.msra.mxu0 0.0
    %90 = vmatprep.subr.mxu0 0.0
    %91 = vmatpush1.msra.mxu0 0.0
    %92 = vmatprep.subr.mxu0 0.0
    %93 = vmatpush1.msra.mxu0 0.0
    %94 = vmatprep.subr.mxu0 0.0
    %95 = vmatpush1.msra.mxu0 0.0
    %96 = vmatprep.subr.mxu0 0.0
    %97 = vmatpush1.msra.mxu0 0.0
    %98 = vmatprep.subr.mxu0 0.0
    %99 = vmatpush1.msra.mxu0 0.0
    %100 = vmatprep.subr.mxu0 0.0
    %101 = vmatpush1.msra.mxu0 0.0
    %102 = vmatprep.subr.mxu0 0.0
    %103 = vmatpush1.msra.mxu0 0.0
    %104 = vmatprep.subr.mxu0 0.0
    %105 = vmatpush1.msra.mxu0 0.0
    %106 = vmatprep.subr.mxu0 0.0
    %107 = vmatpush1.msra.mxu0 0.0
    %108 = vmatprep.subr.mxu0 0.0
    %109 = vmatpush1.msra.mxu0 0.0
    %110 = vmatprep.subr.mxu0 0.0
    %111 = vmatpush1.msra.mxu0 0.0
    %112 = vmatprep.subr.mxu0 0.0
    %113 = vmatpush1.msra.mxu0 0.0
    %114 = vmatprep.subr.mxu0 0.0
    %115 = vmatpush1.msra.mxu0 0.0
    %116 = vmatprep.subr.mxu0 0.0
    %117 = vmatpush1.msra.mxu0 0.0
    %118 = vmatprep.subr.mxu0 0.0
    %119 = vmatpush1.msra.mxu0 0.0
    %120 = vmatprep.subr.mxu0 0.0
    %121 = vmatpush1.msra.mxu0 0.0
    %122 = vmatprep.subr.mxu0 0.0
    %123 = vmatpush1.msra.mxu0 0.0
    %124 = vmatprep.subr.mxu0 0.0
    %125 = vmatpush1.msra.mxu0 0.0
    %126 = vmatprep.subr.mxu0 0.0
    %127 = vmatpush1.msra.mxu0 0.0
    %128 = vmatprep.mubr.f32.mxu0 0.0
    %129 = vmatmul.mubr.f32.gmra.mrb[0].mxu0 %v62
    %v130 = vpop.f32.mrb[0].mxu0
    %v131 = vadd.f32 %v58, %v130
    %v132 = vpop.f32.mrb[0].mxu0
    %133 = vdwg.mxu0
    %v134 = vmax.f32 %v131, 0.0
    %v135 = vld [vmem:[%s5] sm:$0xff]
    %v136 = vld [vmem:[%s5 + $0x8] sm:$0xff]
    %v137 = vld [vmem:[%s5 + $0x10] sm:$0xff]
    %v138 = vld [vmem:[%s5 + $0x18] sm:$0xff]
    %v139 = vld [vmem:[%s5 + $0x20] sm:$0xff]
    %v140 = vld [vmem:[%s5 + $0x28] sm:$0xff]
    %v141 = vld [vmem:[%s5 + $0x30] sm:$0xff]
    %v142 = vld [vmem:[%s5 + $0x38] sm:$0xff]
    %v143 = vld [vmem:[%s5 + $0x40] sm:$0xff]
    %v144 = vld [vmem:[%s5 + $0x48] sm:$0xff]
    %v145 = vld [vmem:[%s5 + $0x50] sm:$0xff]
    %v146 = vld [vmem:[%s5 + $0x58] sm:$0xff]
    %v147 = vld [vmem:[%s5 + $0x60] sm:$0xff]
    %v148 = vld [vmem:[%s5 + $0x68] sm:$0xff]
    %v149 = vld [vmem:[%s5 + $0x70] sm:$0xff]
    %v150 = vld [vmem:[%s5 + $0x78] sm:$0xff]
    %v151 = vld [vmem:[%s6] sm:$0x1]
    %v153 = vlaneseq
    %v154 = vshrl.u32 %v153, 7
    %v155 = vsub.s32 0, %v154
    %v156 = vrot.slane %v151, %v155
    %158 = vmatprep.subr.mxu0 0.0
    %159 = vmatpush1.msra.mxu0 %v135
    %160 = vmatprep.subr.mxu0 0.0
    %161 = vmatpush1.msra.mxu0 %v136
    %162 = vmatprep.subr.mxu0 0.0
    %163 = vmatpush1.msra.mxu0 %v137
    %164 = vmatprep.subr.mxu0 0.0
    %165 = vmatpush1.msra.mxu0 %v138
    %166 = vmatprep.subr.mxu0 0.0
    %167 = vmatpush1.msra.mxu0 %v139
    %168 = vmatprep.subr.mxu0 0.0
    %169 = vmatpush1.msra.mxu0 %v140
    %170 = vmatprep.subr.mxu0 0.0
    %171 = vmatpush1.msra.mxu0 %v141
    %172 = vmatprep.subr.mxu0 0.0
    %173 = vmatpush1.msra.mxu0 %v142
    %174 = vmatprep.subr.mxu0 0.0
    %175 = vmatpush1.msra.mxu0 %v143
    %176 = vmatprep.subr.mxu0 0.0
    %177 = vmatpush1.msra.mxu0 %v144
    %178 = vmatprep.subr.mxu0 0.0
    %179 = vmatpush1.msra.mxu0 %v145
    %180 = vmatprep.subr.mxu0 0.0
    %181 = vmatpush1.msra.mxu0 %v146
    %182 = vmatprep.subr.mxu0 0.0
    %183 = vmatpush1.msra.mxu0 %v147
    %184 = vmatprep.subr.mxu0 0.0
    %185 = vmatpush1.msra.mxu0 %v148
    %186 = vmatprep.subr.mxu0 0.0
    %187 = vmatpush1.msra.mxu0 %v149
    %188 = vmatprep.subr.mxu0 0.0
    %189 = vmatpush1.msra.mxu0 %v150
    %190 = vmatprep.subr.mxu0 0.0
    %191 = vmatpush1.msra.mxu0 0.0
    %192 = vmatprep.subr.mxu0 0.0
    %193 = vmatpush1.msra.mxu0 0.0
    %194 = vmatprep.subr.mxu0 0.0
    %195 = vmatpush1.msra.mxu0 0.0
    %196 = vmatprep.subr.mxu0 0.0
    %197 = vmatpush1.msra.mxu0 0.0
    %198 = vmatprep.subr.mxu0 0.0
    %199 = vmatpush1.msra.mxu0 0.0
    %200 = vmatprep.subr.mxu0 0.0
    %201 = vmatpush1.msra.mxu0 0.0
    %202 = vmatprep.subr.mxu0 0.0
    %203 = vmatpush1.msra.mxu0 0.0
    %204 = vmatprep.subr.mxu0 0.0
    %205 = vmatpush1.msra.mxu0 0.0
    %206 = vmatprep.subr.mxu0 0.0
    %207 = vmatpush1.msra.mxu0 0.0
    %208 = vmatprep.subr.mxu0 0.0
    %209 = vmatpush1.msra.mxu0 0.0
    %210 = vmatprep.subr.mxu0 0.0
    %211 = vmatpush1.msra.mxu0 0.0
    %212 = vmatprep.subr.mxu0 0.0
    %213 = vmatpush1.msra.mxu0 0.0
    %214 = vmatprep.subr.mxu0 0.0
    %215 = vmatpush1.msra.mxu0 0.0
    %216 = vmatprep.subr.mxu0 0.0
    %217 = vmatpush1.msra.mxu0 0.0
    %218 = vmatprep.subr.mxu0 0.0
    %219 = vmatpush1.msra.mxu0 0.0
    %220 = vmatprep.subr.mxu0 0.0
    %221 = vmatpush1.msra.mxu0 0.0
    %222 = vmatprep.mubr.f32.mxu0 0.0
    %223 = vmatmul.mubr.f32.gmra.mrb[0].mxu0 %v134
    %v224 = vpop.f32.mrb[0].mxu0
    %v225 = vadd.f32 %v156, %v224
    %v226 = vpop.f32.mrb[0].mxu0
    %227 = vdwg.mxu0
    %228 = vst.msk [vmem:[#allocation3] sm:$0xff] %vm28, %v225
    // Predicated region
    $region30: #{tpu_custom_call.1} parent=1 // pred_check
      _
    $region31: #{tpu_custom_call.1} parent=1 // pred_check_branch
      %230 = sbr.rel (0) target = $region33
    $region32: #{tpu_custom_call.1} parent=1 // pred_region
      %s232 = ssub.s32 128, 128
      %233 = vsyncadd [#allocation4], %s232
      %s235 = sshll.u32 [#allocation3], 4
      %s236 = int_to_ptr.vmem [resolvable:$true] %s235
      %238 = dma.vmem_to_hbm [thread:$0]  %s236, 128, %s7, [#allocation4]
    $region33: #{tpu_custom_call.1} parent=1 // pred_fallthru
      _
    // Predicated region
    $region34: #{tpu_custom_call.1} parent=1 // pred_check
      _
    $region35: #{tpu_custom_call.1} parent=1 // pred_check_branch
      %240 = sbr.rel (0) target = $region37
    $region36: #{tpu_custom_call.1} parent=1 // pred_region
      %241 = dma.done [#allocation4], 128
    $region37: #{tpu_custom_call.1} parent=1 // pred_fallthru
      _
    %242 = vsyncpa [#allocation4], 1

// kernel: tpu_custom_call.1
$region0: #{tpu_custom_call.1}
  #allocation0 [shape = 'u32[]', space=smem, size = 0x4, offset = 0x4, fixed_abs, tag = 'smem constant byte address 0x4 - core index']
  #allocation1 [shape = 'u32[144,128]{1,0:T(1,128)}', space=vmem, size = 0x12000, scoped, tag = 'internal scratch']
  #allocation2 [shape = 'f32[8,64]{1,0:T(8,128)}', space=vmem, size = 0x1000, scoped, tag = 'scratch operand']
  %s0 = inlined_call_operand.vmem [shape: f32[8,16], index: 0, kind: input, shape index: {}]
  %s1 = inlined_call_operand.vmem [shape: f32[8,16], index: 1, kind: input, shape index: {}]
  %s2 = inlined_call_operand.vmem [shape: f32[8,32], index: 2, kind: input, shape index: {}]
  %s3 = inlined_call_operand.vmem [shape: f32[64,128], index: 3, kind: input, shape index: {}]
  %s4 = inlined_call_operand.vmem [shape: f32[1,128], index: 4, kind: input, shape index: {}]
  %s5 = inlined_call_operand.vmem [shape: f32[128,16], index: 5, kind: input, shape index: {}]
  %s6 = inlined_call_operand.vmem [shape: f32[1,16], index: 6, kind: input, shape index: {}]
  %s7 = inlined_call_operand.hbm [shape: f32[8,16], index: 7, kind: output, shape index: {}]
  %s8 = sld [smem:[#allocation0]]
  $region38: #{tpu_custom_call.1} parent=0
    _
  %s10 = ssub.s32 1, %s8
  %s11 = scalar_select 0, %s10, %s8
  $region1: #{tpu_custom_call.1} parent=0
    #allocation3 [shape = 'u8[4096]{0}', space=vmem, size = 0x1000, scoped, tag = 'output window, operand 0, single buffered']
    #allocation4 [shape = 's32[1]{0}', space=sflag, size = 0x4, scoped, tag = 'scoped memory for tpu_custom_call.1']
    %12 = vsyncpa [#allocation4], 0
    // Predicated region
    $region2: #{tpu_custom_call.1} parent=1 // pred_check
      _
    $region3: #{tpu_custom_call.1} parent=1 // pred_check_branch
      %14 = sbr.rel (0) target = $region5
    $region4: #{tpu_custom_call.1} parent=1 // pred_region
      _
    $region5: #{tpu_custom_call.1} parent=1 // pred_fallthru
      _
    // Predicated region
    $region6: #{tpu_custom_call.1} parent=1 // pred_check
      _
    $region7: #{tpu_custom_call.1} parent=1 // pred_check_branch
      %16 = sbr.rel (0) target = $region9
    $region8: #{tpu_custom_call.1} parent=1 // pred_region
      _
    $region9: #{tpu_custom_call.1} parent=1 // pred_fallthru
      _
    // Predicated region
    $region10: #{tpu_custom_call.1} parent=1 // pred_check
      _
    $region11: #{tpu_custom_call.1} parent=1 // pred_check_branch
      %18 = sbr.rel (0) target = $region13
    $region12: #{tpu_custom_call.1} parent=1 // pred_region
      _
    $region13: #{tpu_custom_call.1} parent=1 // pred_fallthru
      _
    // Predicated region
    $region14: #{tpu_custom_call.1} parent=1 // pred_check
      _
    $region15: #{tpu_custom_call.1} parent=1 // pred_check_branch
      %20 = sbr.rel (0) target = $region17
    $region16: #{tpu_custom_call.1} parent=1 // pred_region
      _
    $region17: #{tpu_custom_call.1} parent=1 // pred_fallthru
      _
    // Predicated region
    $region18: #{tpu_custom_call.1} parent=1 // pred_check
      _
    $region19: #{tpu_custom_call.1} parent=1 // pred_check_branch
      %22 = sbr.rel (0) target = $region21
    $region20: #{tpu_custom_call.1} parent=1 // pred_region
      _
    $region21: #{tpu_custom_call.1} parent=1 // pred_fallthru
      _
    // Predicated region
    $region22: #{tpu_custom_call.1} parent=1 // pred_check
      _
    $region23: #{tpu_custom_call.1} parent=1 // pred_check_branch
      %24 = sbr.rel (0) target = $region25
    $region24: #{tpu_custom_call.1} parent=1 // pred_region
      _
    $region25: #{tpu_custom_call.1} parent=1 // pred_fallthru
      _
    // Predicated region
    $region26: #{tpu_custom_call.1} parent=1 // pred_check
      _
    $region27: #{tpu_custom_call.1} parent=1 // pred_check_branch
      %26 = sbr.rel (0) target = $region29
    $region28: #{tpu_custom_call.1} parent=1 // pred_region
      _
    $region29: #{tpu_custom_call.1} parent=1 // pred_fallthru
      _
    %v27 = vld [vmem:[%s0] sm:$0xff]
    %vm28 = vcmask 130048
    %29 = vst.msk [vmem:[#allocation2] sm:$0xff] %vm28, %v27
    %v30 = vld [vmem:[%s1] sm:$0xff]
    %32 = vrot.lane.b32.xlu0 %v30, 16
    %v33 = vpop.permute.xlu0 %32
    %vm35 = vcmask 261248
    %36 = vst.msk [vmem:[#allocation2] sm:$0xff] %vm35, %v33
    %v37 = vld [vmem:[%s2] sm:$0xff]
    %39 = vrot.lane.b32.xlu0 %v37, 32
    %v40 = vpop.permute.xlu0 %39
    %vm42 = vcmask 523520
    %43 = vst.msk [vmem:[#allocation2] sm:$0xff] %vm42, %v40
    %v44 = vld [vmem:[#allocation2] sm:$0xff]
    %v45 = vld [vmem:[%s3] sm:$0xff]
    %v46 = vld [vmem:[%s3 + $0x8] sm:$0xff]
    %v47 = vld [vmem:[%s3 + $0x10] sm:$0xff]
    %v48 = vld [vmem:[%s3 + $0x18] sm:$0xff]
    %v49 = vld [vmem:[%s3 + $0x20] sm:$0xff]
    %v50 = vld [vmem:[%s3 + $0x28] sm:$0xff]
    %v51 = vld [vmem:[%s3 + $0x30] sm:$0xff]
    %v52 = vld [vmem:[%s3 + $0x38] sm:$0xff]
    %v53 = vld [vmem:[%s4] sm:$0x1]
    %v55 = vlaneseq
    %v56 = vshrl.u32 %v55, 7
    %v57 = vsub.s32 0, %v56
    %v58 = vrot.slane %v53, %v57
    %vm60 = vcmask 523264
    %v62 = vsel %vm60, %v44, 0
    %64 = vmatprep.subr.mxu0 0.0
    %65 = vmatpush1.msra.mxu0 %v45
    %66 = vmatprep.subr.mxu0 0.0
    %67 = vmatpush1.msra.mxu0 %v46
    %68 = vmatprep.subr.mxu0 0.0
    %69 = vmatpush1.msra.mxu0 %v47
    %70 = vmatprep.subr.mxu0 0.0
    %71 = vmatpush1.msra.mxu0 %v48
    %72 = vmatprep.subr.mxu0 0.0
    %73 = vmatpush1.msra.mxu0 %v49
    %74 = vmatprep.subr.mxu0 0.0
    %75 = vmatpush1.msra.mxu0 %v50
    %76 = vmatprep.subr.mxu0 0.0
    %77 = vmatpush1.msra.mxu0 %v51
    %78 = vmatprep.subr.mxu0 0.0
    %79 = vmatpush1.msra.mxu0 %v52
    %80 = vmatprep.subr.mxu0 0.0
    %81 = vmatpush1.msra.mxu0 0.0
    %82 = vmatprep.subr.mxu0 0.0
    %83 = vmatpush1.msra.mxu0 0.0
    %84 = vmatprep.subr.mxu0 0.0
    %85 = vmatpush1.msra.mxu0 0.0
    %86 = vmatprep.subr.mxu0 0.0
    %87 = vmatpush1.msra.mxu0 0.0
    %88 = vmatprep.subr.mxu0 0.0
    %89 = vmatpush1.msra.mxu0 0.0
    %90 = vmatprep.subr.mxu0 0.0
    %91 = vmatpush1.msra.mxu0 0.0
    %92 = vmatprep.subr.mxu0 0.0
    %93 = vmatpush1.msra.mxu0 0.0
    %94 = vmatprep.subr.mxu0 0.0
    %95 = vmatpush1.msra.mxu0 0.0
    %96 = vmatprep.subr.mxu0 0.0
    %97 = vmatpush1.msra.mxu0 0.0
    %98 = vmatprep.subr.mxu0 0.0
    %99 = vmatpush1.msra.mxu0 0.0
    %100 = vmatprep.subr.mxu0 0.0
    %101 = vmatpush1.msra.mxu0 0.0
    %102 = vmatprep.subr.mxu0 0.0
    %103 = vmatpush1.msra.mxu0 0.0
    %104 = vmatprep.subr.mxu0 0.0
    %105 = vmatpush1.msra.mxu0 0.0
    %106 = vmatprep.subr.mxu0 0.0
    %107 = vmatpush1.msra.mxu0 0.0
    %108 = vmatprep.subr.mxu0 0.0
    %109 = vmatpush1.msra.mxu0 0.0
    %110 = vmatprep.subr.mxu0 0.0
    %111 = vmatpush1.msra.mxu0 0.0
    %112 = vmatprep.subr.mxu0 0.0
    %113 = vmatpush1.msra.mxu0 0.0
    %114 = vmatprep.subr.mxu0 0.0
    %115 = vmatpush1.msra.mxu0 0.0
    %116 = vmatprep.subr.mxu0 0.0
    %117 = vmatpush1.msra.mxu0 0.0
    %118 = vmatprep.subr.mxu0 0.0
    %119 = vmatpush1.msra.mxu0 0.0
    %120 = vmatprep.subr.mxu0 0.0
    %121 = vmatpush1.msra.mxu0 0.0
    %122 = vmatprep.subr.mxu0 0.0
    %123 = vmatpush1.msra.mxu0 0.0
    %124 = vmatprep.subr.mxu0 0.0
    %125 = vmatpush1.msra.mxu0 0.0
    %126 = vmatprep.subr.mxu0 0.0
    %127 = vmatpush1.msra.mxu0 0.0
    %128 = vmatprep.mubr.f32.mxu0 0.0
    %129 = vmatmul.mubr.f32.gmra.mrb[0].mxu0 %v62
    %v130 = vpop.f32.mrb[0].mxu0
    %v131 = vadd.f32 %v58, %v130
    %v132 = vpop.f32.mrb[0].mxu0
    %133 = vdwg.mxu0
    %v134 = vmax.f32 %v131, 0.0
    %v135 = vld [vmem:[%s5] sm:$0xff]
    %v136 = vld [vmem:[%s5 + $0x8] sm:$0xff]
    %v137 = vld [vmem:[%s5 + $0x10] sm:$0xff]
    %v138 = vld [vmem:[%s5 + $0x18] sm:$0xff]
    %v139 = vld [vmem:[%s5 + $0x20] sm:$0xff]
    %v140 = vld [vmem:[%s5 + $0x28] sm:$0xff]
    %v141 = vld [vmem:[%s5 + $0x30] sm:$0xff]
    %v142 = vld [vmem:[%s5 + $0x38] sm:$0xff]
    %v143 = vld [vmem:[%s5 + $0x40] sm:$0xff]
    %v144 = vld [vmem:[%s5 + $0x48] sm:$0xff]
    %v145 = vld [vmem:[%s5 + $0x50] sm:$0xff]
    %v146 = vld [vmem:[%s5 + $0x58] sm:$0xff]
    %v147 = vld [vmem:[%s5 + $0x60] sm:$0xff]
    %v148 = vld [vmem:[%s5 + $0x68] sm:$0xff]
    %v149 = vld [vmem:[%s5 + $0x70] sm:$0xff]
    %v150 = vld [vmem:[%s5 + $0x78] sm:$0xff]
    %v151 = vld [vmem:[%s6] sm:$0x1]
    %v153 = vlaneseq
    %v154 = vshrl.u32 %v153, 7
    %v155 = vsub.s32 0, %v154
    %v156 = vrot.slane %v151, %v155
    %158 = vmatprep.subr.mxu0 0.0
    %159 = vmatpush1.msra.mxu0 %v135
    %160 = vmatprep.subr.mxu0 0.0
    %161 = vmatpush1.msra.mxu0 %v136
    %162 = vmatprep.subr.mxu0 0.0
    %163 = vmatpush1.msra.mxu0 %v137
    %164 = vmatprep.subr.mxu0 0.0
    %165 = vmatpush1.msra.mxu0 %v138
    %166 = vmatprep.subr.mxu0 0.0
    %167 = vmatpush1.msra.mxu0 %v139
    %168 = vmatprep.subr.mxu0 0.0
    %169 = vmatpush1.msra.mxu0 %v140
    %170 = vmatprep.subr.mxu0 0.0
    %171 = vmatpush1.msra.mxu0 %v141
    %172 = vmatprep.subr.mxu0 0.0
    %173 = vmatpush1.msra.mxu0 %v142
    %174 = vmatprep.subr.mxu0 0.0
    %175 = vmatpush1.msra.mxu0 %v143
    %176 = vmatprep.subr.mxu0 0.0
    %177 = vmatpush1.msra.mxu0 %v144
    %178 = vmatprep.subr.mxu0 0.0
    %179 = vmatpush1.msra.mxu0 %v145
    %180 = vmatprep.subr.mxu0 0.0
    %181 = vmatpush1.msra.mxu0 %v146
    %182 = vmatprep.subr.mxu0 0.0
    %183 = vmatpush1.msra.mxu0 %v147
    %184 = vmatprep.subr.mxu0 0.0
    %185 = vmatpush1.msra.mxu0 %v148
    %186 = vmatprep.subr.mxu0 0.0
    %187 = vmatpush1.msra.mxu0 %v149
    %188 = vmatprep.subr.mxu0 0.0
    %189 = vmatpush1.msra.mxu0 %v150
    %190 = vmatprep.subr.mxu0 0.0
    %191 = vmatpush1.msra.mxu0 0.0
    %192 = vmatprep.subr.mxu0 0.0
    %193 = vmatpush1.msra.mxu0 0.0
    %194 = vmatprep.subr.mxu0 0.0
    %195 = vmatpush1.msra.mxu0 0.0
    %196 = vmatprep.subr.mxu0 0.0
    %197 = vmatpush1.msra.mxu0 0.0
    %198 = vmatprep.subr.mxu0 0.0
    %199 = vmatpush1.msra.mxu0 0.0
    %200 = vmatprep.subr.mxu0 0.0
    %201 = vmatpush1.msra.mxu0 0.0
    %202 = vmatprep.subr.mxu0 0.0
    %203 = vmatpush1.msra.mxu0 0.0
    %204 = vmatprep.subr.mxu0 0.0
    %205 = vmatpush1.msra.mxu0 0.0
    %206 = vmatprep.subr.mxu0 0.0
    %207 = vmatpush1.msra.mxu0 0.0
    %208 = vmatprep.subr.mxu0 0.0
    %209 = vmatpush1.msra.mxu0 0.0
    %210 = vmatprep.subr.mxu0 0.0
    %211 = vmatpush1.msra.mxu0 0.0
    %212 = vmatprep.subr.mxu0 0.0
    %213 = vmatpush1.msra.mxu0 0.0
    %214 = vmatprep.subr.mxu0 0.0
    %215 = vmatpush1.msra.mxu0 0.0
    %216 = vmatprep.subr.mxu0 0.0
    %217 = vmatpush1.msra.mxu0 0.0
    %218 = vmatprep.subr.mxu0 0.0
    %219 = vmatpush1.msra.mxu0 0.0
    %220 = vmatprep.subr.mxu0 0.0
    %221 = vmatpush1.msra.mxu0 0.0
    %222 = vmatprep.mubr.f32.mxu0 0.0
    %223 = vmatmul.mubr.f32.gmra.mrb[0].mxu0 %v134
    %v224 = vpop.f32.mrb[0].mxu0
    %v225 = vadd.f32 %v156, %v224
    %v226 = vpop.f32.mrb[0].mxu0
    %227 = vdwg.mxu0
    %228 = vst.msk [vmem:[#allocation3] sm:$0xff] %vm28, %v225
    // Predicated region
    $region30: #{tpu_custom_call.1} parent=1 // pred_check
      _
    $region31: #{tpu_custom_call.1} parent=1 // pred_check_branch
      %230 = sbr.rel (0) target = $region33
    $region32: #{tpu_custom_call.1} parent=1 // pred_region
      %s232 = ssub.s32 128, 128
      %233 = vsyncadd [#allocation4], %s232
      %s235 = sshll.u32 [#allocation3], 4
      %s236 = int_to_ptr.vmem [resolvable:$true] %s235
      %238 = dma.vmem_to_hbm [thread:$0]  %s236, 128, %s7, [#allocation4]
    $region33: #{tpu_custom_call.1} parent=1 // pred_fallthru
      _
    // Predicated region
    $region34: #{tpu_custom_call.1} parent=1 // pred_check
      _
    $region35: #{tpu_custom_call.1} parent=1 // pred_check_branch
      %240 = sbr.rel (0) target = $region37
    $region36: #{tpu_custom_call.1} parent=1 // pred_region
      %241 = dma.done [#allocation4], 128
    $region37: #{tpu_custom_call.1} parent=1 // pred_fallthru
      _
    %242 = vsyncpa [#allocation4], 1

</llo_original>
